<compile_context>
chip_gen: v5e
topology: v5e:2x2
jax: 0.10.0
libtpu: 0.0.40
codegen_flags: <defaults>
</compile_context>

<pallas_src>
import functools

import jax
import jax.numpy as jnp
import numpy as np
from jax.experimental import pallas as pl
from jax.experimental.pallas import tpu as pltpu

LANE = 128


def _seg_ssq_kernel(w_ref, seg_ref, o_ref, *, nwp):
    """One grid step of the segmented sum-of-squares reduction.

    w_ref  : (TR, 128)   packed weight rows (native dtype), zero padded
    seg_ref: (1, TR)     int32 segment id per row (== nwp for padding rows)
    o_ref  : (nwp, 128)  f32 lane-wide per-weight sum-of-squares accumulator,
                         resident across the reduction grid axis (axis 1)
    """
    @pl.when(pl.program_id(1) == 0)
    def _():
        o_ref[...] = jnp.zeros_like(o_ref)

    x = w_ref[...].astype(jnp.float32)          # cast in-kernel, f32 math
    xx = x * x                                  # (TR, 128)   VPU
    seg = seg_ref[...]                          # (1, TR)
    # one-hot selector (nwp, TR); padding rows (seg == nwp) match nothing.
    sel = (jax.lax.broadcasted_iota(jnp.int32, (nwp, seg.shape[1]), 0)
           == seg).astype(jnp.float32)
    # Segmented reduction over rows as one small MXU matmul; lane axis kept
    # un-reduced (lane-wide accumulator), cross-lane reduce deferred to the
    # finalize step outside the hot loop.
    o_ref[...] += jnp.dot(sel, xx, preferred_element_type=jnp.float32)


def regularization_loss(weights, weight_decay, p=2):
    """weights: list of jnp arrays (the model's `*weight*` parameters)."""
    if p != 2:
        raise NotImplementedError("only p=2 (L2 norm) is implemented")
    weights = [w for w in weights if int(np.prod(w.shape)) > 0]
    if not weights:
        return jnp.float32(0.0)

    # ---- pack: flatten, pad each weight to a 128-lane row boundary, concat
    dtype = jnp.result_type(*[w.dtype for w in weights])   # keep native dtype
    itemsize = np.dtype(dtype).itemsize
    chunks, rows_per_w = [], []
    for w in weights:
        f = jnp.ravel(w).astype(dtype)
        nrows = -(-int(f.size) // LANE)
        f = jnp.pad(f, (0, nrows * LANE - int(f.size)))
        chunks.append(f.reshape(nrows, LANE))
        rows_per_w.append(nrows)
    data = jnp.concatenate(chunks, axis=0)                  # (total_rows, 128)
    total_rows = int(data.shape[0])

    nw = len(weights)
    nwp = max(8, -(-nw // 8) * 8)                           # sublane-pad segments

    # ---- tile / grid selection --------------------------------------------
    tr = 2048                                               # ~1 MiB f32 block
    # keep data block + (nwp, tr) one-hot intermediate comfortably in VMEM
    while tr > 256 and tr * (LANE * itemsize + 4 * nwp) > (8 << 20):
        tr //= 2

    if total_rows <= tr:
        # whole problem fits one block: single grid step, no pipeline
        ncore, tiles_per_core = 1, 1
        tr = -(-total_rows // 8) * 8
    else:
        ncore = 2                 # leading "parallel" axis (2 TCs on v7x)
        n_tiles = -(-total_rows // tr)
        n_tiles = -(-n_tiles // ncore) * ncore
        tiles_per_core = n_tiles // ncore

    rows_padded = ncore * tiles_per_core * tr
    data = jnp.pad(data, ((0, rows_padded - total_rows), (0, 0)))

    seg_np = np.full((1, rows_padded), nwp, dtype=np.int32)  # sentinel for pad
    seg_np[0, :total_rows] = np.repeat(
        np.arange(nw, dtype=np.int32), np.asarray(rows_per_w, dtype=np.int64))
    seg = jnp.asarray(seg_np)

    # ---- explicit VMEM budget (double-buffered inputs + resident output) ---
    vmem_need = (2 * tr * LANE * itemsize        # data block, double buffered
                 + 2 * tr * 4                    # seg block, double buffered
                 + 2 * nwp * LANE * 4            # resident output block
                 + nwp * tr * 4                  # one-hot intermediate
                 + (4 << 20))                    # headroom
    vmem_limit = int(min(max(vmem_need, 16 << 20), 32 << 20))

    kernel = functools.partial(_seg_ssq_kernel, nwp=nwp)
    partial = pl.pallas_call(
        kernel,
        out_shape=jax.ShapeDtypeStruct((ncore, nwp, LANE), jnp.float32),
        grid_spec=pltpu.PrefetchScalarGridSpec(
            num_scalar_prefetch=0,
            grid=(ncore, tiles_per_core),
            in_specs=[
                pl.BlockSpec((tr, LANE),
                             lambda c, j: (c * tiles_per_core + j, 0)),
                pl.BlockSpec((1, tr),
                             lambda c, j: (0, c * tiles_per_core + j)),
            ],
            out_specs=pl.BlockSpec((None, nwp, LANE), lambda c, j: (c, 0, 0)),
        ),
        compiler_params=pltpu.CompilerParams(
            dimension_semantics=("parallel", "arbitrary"),
            vmem_limit_bytes=vmem_limit),
    )(data, seg)

    # ---- tiny finalize on (ncore, nwp, 128) values --------------------------
    ssq = jnp.sum(partial, axis=(0, 2))[:nw]      # per-weight sum(w^2)
    norms = jnp.sqrt(ssq)                         # ||w_i||_2
    return jnp.asarray(weight_decay, jnp.float32) * jnp.sum(norms)


if __name__ == "__main__":
    key = jax.random.PRNGKey(0)
    k1, k2, k3, k4, k5 = jax.random.split(key, 5)
    weight_decay = 1e-3

    # Small "model": conv weight (OIHW) + two linear weights ([out, in]).
    weights_small = [
        jax.random.normal(k1, (4, 4, 3, 3), dtype=jnp.float32),
        jax.random.normal(k2, (32, 64), dtype=jnp.float32),
        jax.random.normal(k3, (10, 32), dtype=jnp.float32),
    ]
    loss = jax.block_until_ready(regularization_loss(weights_small, weight_decay))
    ref = weight_decay * sum(float(jnp.sqrt(jnp.sum(w.astype(jnp.float32) ** 2)))
                             for w in weights_small)
    assert jnp.allclose(loss, ref, rtol=1e-4, atol=1e-6), (loss, ref)

    # Larger mixed-size bf16 case: exercises native-dtype packing and the
    # multi-tile, two-core pipelined path.
    weights_big = [
        jax.random.normal(k4, (640, 2048), dtype=jnp.bfloat16),
        jax.random.normal(k5, (100,), dtype=jnp.bfloat16),
        weights_small[0].astype(jnp.bfloat16),
    ]
    loss2 = jax.block_until_ready(regularization_loss(weights_big, weight_decay))
    ref2 = weight_decay * sum(float(jnp.sqrt(jnp.sum(w.astype(jnp.float32) ** 2)))
                              for w in weights_big)
    assert jnp.allclose(loss2, ref2, rtol=1e-4, atol=1e-6), (loss2, ref2)

    print("KERNEL_OK")
</pallas_src>

<mosaic_0001>
module attributes {stable_mosaic.version = 11 : i64} {
  func.func @_seg_ssq_kernel(%arg0: i32, %arg1: i32, %arg2: memref<24x128xf32, #tpu.memory_space<vmem>>, %arg3: memref<1x24xi32, #tpu.memory_space<vmem>>, %arg4: memref<1x8x128xf32, #tpu.memory_space<vmem>>) attributes {dimension_semantics = [#tpu.dimension_semantics<parallel>, #tpu.dimension_semantics<arbitrary>], iteration_bounds = array<i64: 1, 1>, scalar_prefetch = 0 : i64, scratch_operands = 0 : i64, tpu.core_type = #tpu.core_type<tc>, window_params = [{transform_indices = @transform_0, window_bounds = array<i64: 24, 128>}, {transform_indices = @transform_1, window_bounds = array<i64: 1, 24>}, {transform_indices = @transform_2, window_bounds = array<i64: 1, 8, 128>}]} {
    %c0_i32 = arith.constant 0 : i32
    %0 = arith.cmpi eq, %arg1, %c0_i32 : i32
    %1 = arith.extui %0 : i1 to i32
    %c0_i32_0 = arith.constant 0 : i32
    %2 = arith.cmpi ne, %1, %c0_i32_0 : i32
    scf.if %2 {
      %cst_10 = arith.constant 0.000000e+00 : f32
      %18 = vector.broadcast %cst_10 : f32 to vector<8x128xf32>
      %c0_11 = arith.constant 0 : index
      %c0_12 = arith.constant 0 : index
      %c0_13 = arith.constant 0 : index
      %19 = vector.load %arg4[%c0_11, %c0_12, %c0_13] : memref<1x8x128xf32, #tpu.memory_space<vmem>>, vector<1x8x128xf32>
      %20 = vector.shape_cast %19 : vector<1x8x128xf32> to vector<8x128xf32>
      %21 = vector.shape_cast %18 : vector<8x128xf32> to vector<1x8x128xf32>
      tpu.vector_store %arg4[%c0_11, %c0_12, %c0_13], %21 {strides = array<i32>} : memref<1x8x128xf32, #tpu.memory_space<vmem>>, vector<1x8x128xf32>,
    } else {
    }
    %c0 = arith.constant 0 : index
    %c0_1 = arith.constant 0 : index
    %3 = vector.load %arg2[%c0, %c0_1] : memref<24x128xf32, #tpu.memory_space<vmem>>, vector<24x128xf32>
    %4 = arith.mulf %3, %3 : vector<24x128xf32>
    %c0_2 = arith.constant 0 : index
    %c0_3 = arith.constant 0 : index
    %5 = vector.load %arg3[%c0_2, %c0_3] : memref<1x24xi32, #tpu.memory_space<vmem>>, vector<1x24xi32>
    %6 = tpu.iota {dimensions = array<i32: 0>} : vector<8x24xi32>
    %7 = vector.broadcast %5 : vector<1x24xi32> to vector<8x24xi32>
    %8 = arith.cmpi eq, %6, %7 : vector<8x24xi32>
    %9 = arith.extui %8 : vector<8x24xi1> to vector<8x24xi32>
    %10 = arith.sitofp %9 : vector<8x24xi32> to vector<8x24xf32>
    %c0_4 = arith.constant 0 : index
    %c0_5 = arith.constant 0 : index
    %c0_6 = arith.constant 0 : index
    %11 = vector.load %arg4[%c0_4, %c0_5, %c0_6] : memref<1x8x128xf32, #tpu.memory_space<vmem>>, vector<1x8x128xf32>
    %12 = vector.shape_cast %11 : vector<1x8x128xf32> to vector<8x128xf32>
    %cst = arith.constant dense<0.000000e+00> : vector<8x128xf32>
    %13 = tpu.matmul %10, %4, %cst {dimension_numbers = #tpu.dot_dimension_numbers<[1], [0], [0], [1], [0, 0, 1, 1], [], []>} : vector<8x24xf32>, vector<24x128xf32>, vector<8x128xf32> -> vector<8x128xf32>
    %14 = arith.addf %12, %13 : vector<8x128xf32>
    %c0_7 = arith.constant 0 : index
    %c0_8 = arith.constant 0 : index
    %c0_9 = arith.constant 0 : index
    %15 = vector.load %arg4[%c0_7, %c0_8, %c0_9] : memref<1x8x128xf32, #tpu.memory_space<vmem>>, vector<1x8x128xf32>
    %16 = vector.shape_cast %15 : vector<1x8x128xf32> to vector<8x128xf32>
    %17 = vector.shape_cast %14 : vector<8x128xf32> to vector<1x8x128xf32>
    tpu.vector_store %arg4[%c0_7, %c0_8, %c0_9], %17 {strides = array<i32>} : memref<1x8x128xf32, #tpu.memory_space<vmem>>, vector<1x8x128xf32>,
    return
  }
  func.func @transform_0(%arg0: i32, %arg1: i32) -> (i32, i32) {
    %c1_i32 = arith.constant 1 : i32
    %0 = arith.muli %arg0, %c1_i32 : i32
    %1 = arith.addi %0, %arg1 : i32
    %c0_i32 = arith.constant 0 : i32
    %c0_i32_0 = arith.constant 0 : i32
    return %1, %c0_i32 : i32, i32
  }
  func.func @transform_1(%arg0: i32, %arg1: i32) -> (i32, i32) {
    %c1_i32 = arith.constant 1 : i32
    %0 = arith.muli %arg0, %c1_i32 : i32
    %1 = arith.addi %0, %arg1 : i32
    %c0_i32 = arith.constant 0 : i32
    %c0_i32_0 = arith.constant 0 : i32
    return %c0_i32, %1 : i32, i32
  }
  func.func @transform_2(%arg0: i32, %arg1: i32) -> (i32, i32, i32) {
    %c0_i32 = arith.constant 0 : i32
    %c0_i32_0 = arith.constant 0 : i32
    %c0_i32_1 = arith.constant 0 : i32
    return %arg0, %c0_i32, %c0_i32_0 : i32, i32, i32
  }
}

</mosaic_0001>

<llo_original>
// kernel: tpu_custom_call.1
$region0: #{tpu_custom_call.1}
  #allocation0 [shape = 'u32[]', space=smem, size = 0x4, offset = 0x4, fixed_abs, tag = 'smem constant byte address 0x4 - core index']
  #allocation1 [shape = 'u32[72,128]{1,0:T(1,128)}', space=vmem, size = 0x9000, scoped, tag = 'internal scratch']
  %s0 = inlined_call_operand.hbm [shape: f32[24,128], index: 0, kind: input, shape index: {}]
  %s1 = inlined_call_operand.hbm [shape: s32[1,24], index: 1, kind: input, shape index: {}]
  %s2 = inlined_call_operand.hbm [shape: f32[1,8,128], index: 2, kind: output, shape index: {}]
  %s3 = sld [smem:[#allocation0]]
  $region30: #{tpu_custom_call.1} parent=0
    _
  %s5 = ssub.s32 1, %s3
  %s6 = scalar_select 0, %s5, %s3
  $region1: #{tpu_custom_call.1} parent=0
    #allocation2 [shape = 'u8[12288]{0}', space=vmem, size = 0x3000, scoped, tag = 'input window, operand 0, single buffered']
    #allocation3 [shape = 's32[1]{0}', space=sflag, size = 0x4, scoped, tag = 'scoped memory for tpu_custom_call.1']
    #allocation4 [shape = 's32[1]{0}', space=sflag, size = 0x4, scoped, tag = 'scoped memory for tpu_custom_call.1']
    #allocation5 [shape = 'u8[512]{0}', space=vmem, size = 0x400, scoped, tag = 'input window, operand 1, single buffered']
    #allocation6 [shape = 's32[1]{0}', space=sflag, size = 0x4, scoped, tag = 'scoped memory for tpu_custom_call.1']
    #allocation7 [shape = 'u8[4096]{0}', space=vmem, size = 0x1000, scoped, tag = 'output window, operand 0, single buffered']
    %7 = vsyncpa [#allocation3], 0
    %8 = vsyncpa [#allocation6], 0
    %9 = vsyncpa [#allocation4], 0
    // Predicated region
    $region2: #{tpu_custom_call.1} parent=1 // pred_check
      _
    $region3: #{tpu_custom_call.1} parent=1 // pred_check_branch
      %11 = sbr.rel (0) target = $region5
    $region4: #{tpu_custom_call.1} parent=1 // pred_region
      %s12 = sadd.s32 0, 0
      %s13 = smul.u32 3, %s12
      %15 = vsyncadd [#allocation3], 0
      %s16 = smul.addr %s13, 8
      %s17 = scalar_lea.hbm %s0, %s16
      %s18 = sshll.u32 %s17, 4
      %s19 = int_to_ptr.hbm [resolvable:$true] %s18
      %s20 = sshll.u32 [#allocation2], 4
      %s21 = int_to_ptr.vmem [resolvable:$true] %s20
      %26 = dma.hbm_to_vmem [thread:$0]  %s19, 384, %s21, [#allocation3], 128, 128, 8
    $region5: #{tpu_custom_call.1} parent=1 // pred_fallthru
      _
    // Predicated region
    $region6: #{tpu_custom_call.1} parent=1 // pred_check
      _
    $region7: #{tpu_custom_call.1} parent=1 // pred_check_branch
      %28 = sbr.rel (0) target = $region9
    $region8: #{tpu_custom_call.1} parent=1 // pred_region
      %s29 = sadd.s32 0, 0
      %31 = vsyncadd [#allocation6], 0
      %s32 = scalar_lea.hbm %s1, %s29
      %s34 = sshll.u32 %s32, 4
      %s35 = int_to_ptr.hbm [resolvable:$true] %s34
      %s36 = sshll.u32 [#allocation5], 4
      %s37 = int_to_ptr.vmem [resolvable:$true] %s36
      %39 = dma.hbm_to_vmem [thread:$0]  %s35, 16, %s37, [#allocation6]
    $region9: #{tpu_custom_call.1} parent=1 // pred_fallthru
      _
    // Predicated region
    $region10: #{tpu_custom_call.1} parent=1 // pred_check
      _
    $region11: #{tpu_custom_call.1} parent=1 // pred_check_branch
      %41 = sbr.rel (0) target = $region13
    $region12: #{tpu_custom_call.1} parent=1 // pred_region
      %43 = dma.done [#allocation3], 384
    $region13: #{tpu_custom_call.1} parent=1 // pred_fallthru
      _
    // Predicated region
    $region14: #{tpu_custom_call.1} parent=1 // pred_check
      _
    $region15: #{tpu_custom_call.1} parent=1 // pred_check_branch
      %45 = sbr.rel (0) target = $region17
    $region16: #{tpu_custom_call.1} parent=1 // pred_region
      %47 = dma.done [#allocation6], 16
    $region17: #{tpu_custom_call.1} parent=1 // pred_fallthru
      _
    %s48 = sadd.s32 0, 0
    %s49 = smul.u32 3, %s48
    %s50 = sadd.s32 0, 0
    %p51 = scmp.eq.s32.totalorder 0, 0
    // Predicated region
    $region18: #{tpu_custom_call.1} parent=1 // pred_check
      %p52 = pneg %p51
    $region19: #{tpu_custom_call.1} parent=1 // pred_check_branch
      %54 = sbr.rel (%p52) target = $region21
    $region20: #{tpu_custom_call.1} parent=1 // pred_region
      %55 = vst [vmem:[#allocation7] sm:$0xff] 0.0
    $region21: #{tpu_custom_call.1} parent=1 // pred_fallthru
      _
    %v56 = vld [vmem:[#allocation2] sm:$0xff]
    %v57 = vld [vmem:[#allocation2 + $0x8] sm:$0xff]
    %v58 = vld [vmem:[#allocation2 + $0x10] sm:$0xff]
    %v59 = vmul.f32 %v56, %v56
    %v60 = vmul.f32 %v57, %v57
    %v61 = vmul.f32 %v58, %v58
    %v62 = vld [vmem:[#allocation5] sm:$0x1]
    %v63 = vlaneseq
    %v64 = vshrl.u32 %v63, 7
    %v65 = vperm.slane %v62, 0
    %vm66 = vcmp.eq.s32.totalorder %v64, %v65
    %v67 = vsel %vm66, 1, 0
    %v68 = vcvt.s32.f32 %v67
    %v69 = vld [vmem:[#allocation7] sm:$0xff]
    %vm70 = vcmask 195584
    %v72 = vsel %vm70, %v68, 0
    %74 = vmatpush.msra.mxu0 0.0
    %75 = vmatpush.msra.mxu0 0.0
    %76 = vmatpush.msra.mxu0 0.0
    %77 = vmatpush.msra.mxu0 0.0
    %78 = vmatpush.msra.mxu0 0.0
    %79 = vmatpush.msra.mxu0 0.0
    %80 = vmatpush.msra.mxu0 0.0
    %81 = vmatpush.msra.mxu0 0.0
    %82 = vmatpush.msra.mxu0 0.0
    %83 = vmatpush.msra.mxu0 0.0
    %84 = vmatpush.msra.mxu0 0.0
    %85 = vmatpush.msra.mxu0 0.0
    %86 = vmatpush.msra.mxu0 0.0
    %87 = vmatpush.msra.mxu0 %v61
    %88 = vmatpush.msra.mxu0 %v60
    %89 = vmatpush.msra.mxu0 %v59
    %90 = vmatmul.f32.gmra.mxu0 %v72
    %v91 = vpop.f32.mrf.mxu0
    %v92 = vadd.f32 0.0, %v91
    %93 = vdwg.mxu0
    %v94 = vadd.f32 %v69, %v92
    %95 = vst [vmem:[#allocation7] sm:$0xff] %v94
    // Predicated region
    $region22: #{tpu_custom_call.1} parent=1 // pred_check
      _
    $region23: #{tpu_custom_call.1} parent=1 // pred_check_branch
      %97 = sbr.rel (0) target = $region25
    $region24: #{tpu_custom_call.1} parent=1 // pred_region
      %99 = vsyncadd [#allocation4], 0
      %s101 = sshll.u32 [#allocation7], 4
      %s102 = int_to_ptr.vmem [resolvable:$true] %s101
      %s103 = sshll.u32 %s2, 4
      %s104 = int_to_ptr.hbm [resolvable:$true] %s103
      %106 = dma.vmem_to_hbm [thread:$0]  %s102, 128, %s104, [#allocation4]
    $region25: #{tpu_custom_call.1} parent=1 // pred_fallthru
      _
    // Predicated region
    $region26: #{tpu_custom_call.1} parent=1 // pred_check
      _
    $region27: #{tpu_custom_call.1} parent=1 // pred_check_branch
      %108 = sbr.rel (0) target = $region29
    $region28: #{tpu_custom_call.1} parent=1 // pred_region
      %110 = dma.done [#allocation4], 128
    $region29: #{tpu_custom_call.1} parent=1 // pred_fallthru
      _
    %111 = vsyncpa [#allocation3], 1
    %112 = vsyncpa [#allocation6], 1
    %113 = vsyncpa [#allocation4], 1

</llo_original>
